<compile_context>
chip_gen: v5e
topology: v5e:2x2
jax: 0.10.0
libtpu: 0.0.40
codegen_flags: <defaults>
</compile_context>

<pallas_src>
import math
import functools

import jax
import jax.numpy as jnp
from jax import lax
from jax.experimental import pallas as pl
from jax.experimental.pallas import tpu as pltpu


def _pick_tile(dim, target, *, lane=False):
    """Largest tile <= target that divides dim and stays 8/128-aligned, else the full dim."""
    if dim <= target:
        return dim
    step = 128 if lane else 8
    t = target
    while t >= step:
        if dim % t == 0:
            return t
        t //= 2
    return dim


# ---------------------------------------------------------------------------
# Tiled projection matmul:  y = x @ w.T      (x: (M, K), w: (N, K))
# ---------------------------------------------------------------------------

def _linear_kernel(x_ref, w_ref, o_ref, acc_ref):
    @pl.when(pl.program_id(2) == 0)
    def _init():
        acc_ref[...] = jnp.zeros(acc_ref.shape, jnp.float32)

    # operands stay in their input dtype (bf16-friendly on the MXU); accumulate in f32
    acc_ref[...] += lax.dot_general(
        x_ref[...], w_ref[...],
        dimension_numbers=(((1,), (1,)), ((), ())),
        preferred_element_type=jnp.float32)

    @pl.when(pl.program_id(2) == pl.num_programs(2) - 1)
    def _finalize():
        o_ref[...] = acc_ref[...].astype(o_ref.dtype)


def linear(x2d, w, *, tm=256, tn=256, tk=512):
    # NOTE: 256/512 tiles for v6e/v7x (2x256 MXU); drop to tm=tn=128 on v5e.
    M, K = x2d.shape
    N, K2 = w.shape
    assert K == K2
    tm = _pick_tile(M, tm)
    tn = _pick_tile(N, tn, lane=True)
    tk = _pick_tile(K, tk, lane=True)
    grid = (M // tm, N // tn, K // tk)
    return pl.pallas_call(
        _linear_kernel,
        out_shape=jax.ShapeDtypeStruct((M, N), x2d.dtype),
        grid=grid,
        in_specs=[pl.BlockSpec((tm, tk), lambda i, j, k: (i, k)),
                  pl.BlockSpec((tn, tk), lambda i, j, k: (j, k))],
        out_specs=pl.BlockSpec((tm, tn), lambda i, j, k: (i, j)),
        scratch_shapes=[pltpu.VMEM((tm, tn), jnp.float32)],
        compiler_params=pltpu.CompilerParams(
            dimension_semantics=("parallel", "parallel", "arbitrary")),
    )(x2d, w)


# ---------------------------------------------------------------------------
# Rotary embedding: one lane-dense kernel over the full head_dim
# ---------------------------------------------------------------------------

def _rope_kernel(x_ref, cos_ref, sin_ref, rot_ref, o_ref):
    # Interleaved (real, imag) rotation: out = x * cos + (x @ R) * sin, where the constant
    # pair-swap matrix R maps (..., x[2i], x[2i+1], ...) -> (..., -x[2i+1], x[2i], ...).
    # Math in f32, matching torch's xq.float() in apply_rotary_emb.
    x = x_ref[0, 0].astype(jnp.float32)                                   # (ts, Dh)
    x_rot = jnp.dot(x, rot_ref[...], preferred_element_type=jnp.float32)  # (ts, Dh)
    o_ref[0, 0] = (x * cos_ref[...] + x_rot * sin_ref[...]).astype(o_ref.dtype)


def apply_rotary_emb(x_hm, cos_full, sin_full, rot):
    # x_hm: (B, H, S, Dh) head-major;  cos/sin: (S, Dh) lane-dense;  rot: (Dh, Dh)
    # TODO(synk): fuse RoPE into the Q/K projection epilogue (apply it on the matmul output tile).
    B, H, S, Dh = x_hm.shape
    ts = _pick_tile(S, 256)
    grid = (B, H, S // ts)
    return pl.pallas_call(
        _rope_kernel,
        out_shape=jax.ShapeDtypeStruct(x_hm.shape, x_hm.dtype),
        grid=grid,
        in_specs=[pl.BlockSpec((1, 1, ts, Dh), lambda b, h, si: (b, h, si, 0)),
                  pl.BlockSpec((ts, Dh), lambda b, h, si: (si, 0)),
                  pl.BlockSpec((ts, Dh), lambda b, h, si: (si, 0)),
                  pl.BlockSpec((Dh, Dh), lambda b, h, si: (0, 0))],
        out_specs=pl.BlockSpec((1, 1, ts, Dh), lambda b, h, si: (b, h, si, 0)),
        compiler_params=pltpu.CompilerParams(
            dimension_semantics=("parallel", "parallel", "parallel")),
    )(x_hm, cos_full, sin_full, rot)


# ---------------------------------------------------------------------------
# KV-tiled flash attention with GQA head grouping and in-kernel causal mask
# ---------------------------------------------------------------------------

def _flash_kernel(q_ref, k_ref, v_ref, o_ref, m_ref, l_ref, acc_ref,
                  *, scale, seqlen, start_pos):
    t = pl.program_id(2)

    @pl.when(t == 0)
    def _init():
        m_ref[...] = jnp.full(m_ref.shape, -jnp.inf, jnp.float32)
        l_ref[...] = jnp.zeros(l_ref.shape, jnp.float32)
        acc_ref[...] = jnp.zeros(acc_ref.shape, jnp.float32)

    q = q_ref[0, 0] * scale          # fold 1/sqrt(Dh) into q: Sg*Dh mults instead of Sg*T
    k = k_ref[0, 0]                  # (tk, Dh), kept in the input dtype for the MXU
    v = v_ref[0, 0]
    tk = k.shape[0]

    s = lax.dot_general(q, k,
                        dimension_numbers=(((1,), (1,)), ((), ())),
                        preferred_element_type=jnp.float32)   # (Sg, tk)

    # causal mask generated in-kernel (no dense (S, T) mask streamed from HBM)
    Sg = s.shape[0]
    rows = lax.broadcasted_iota(jnp.int32, (Sg, tk), 0)
    cols = lax.broadcasted_iota(jnp.int32, (Sg, tk), 1)
    qpos = start_pos + rows % seqlen          # grouped rows: row = rep_idx * seqlen + s_idx
    kpos = t * tk + cols
    s = jnp.where(kpos <= qpos, s, -jnp.inf)

    m_prev = m_ref[...]
    m_new = jnp.maximum(m_prev, jnp.max(s, axis=-1, keepdims=True))
    alpha = jnp.exp(m_prev - m_new)
    p = jnp.exp(s - m_new)
    l_ref[...] = alpha * l_ref[...] + jnp.sum(p, axis=-1, keepdims=True)
    acc_ref[...] = alpha * acc_ref[...] + jnp.dot(
        p.astype(v.dtype), v, preferred_element_type=jnp.float32)
    m_ref[...] = m_new

    @pl.when(t == pl.num_programs(2) - 1)
    def _finalize():
        o_ref[0, 0] = (acc_ref[...] *
                       pl.reciprocal(l_ref[...], approx=True)).astype(o_ref.dtype)


def flash_attention(q, k, v, *, start_pos, seqlen):
    # q: (B, KH, Sg = n_rep*S, Dh) grouped GQA queries;  k, v: (B, KH, T, Dh) from the cache.
    B, KH, Sg, Dh = q.shape
    T = k.shape[2]
    tk = _pick_tile(T, 256)
    grid = (B, KH, T // tk)
    kernel = functools.partial(_flash_kernel, scale=1.0 / math.sqrt(Dh),
                               seqlen=seqlen, start_pos=start_pos)
    return pl.pallas_call(
        kernel,
        out_shape=jax.ShapeDtypeStruct((B, KH, Sg, Dh), q.dtype),
        grid=grid,
        in_specs=[pl.BlockSpec((1, 1, Sg, Dh), lambda b, g, t: (b, g, 0, 0)),
                  pl.BlockSpec((1, 1, tk, Dh), lambda b, g, t: (b, g, t, 0)),
                  pl.BlockSpec((1, 1, tk, Dh), lambda b, g, t: (b, g, t, 0))],
        out_specs=pl.BlockSpec((1, 1, Sg, Dh), lambda b, g, t: (b, g, 0, 0)),
        scratch_shapes=[pltpu.VMEM((Sg, 1), jnp.float32),     # m (running max)
                        pltpu.VMEM((Sg, 1), jnp.float32),     # l (running denom)
                        pltpu.VMEM((Sg, Dh), jnp.float32)],   # acc
        compiler_params=pltpu.CompilerParams(
            dimension_semantics=("parallel", "parallel", "arbitrary")),
    )(q, k, v)


# ---------------------------------------------------------------------------
# Attention.forward equivalent (single shard)
# ---------------------------------------------------------------------------

def attention_forward(x, start_pos, cos_full, sin_full, rot, cache_k, cache_v,
                      wq, wk, wv, wo, *, n_heads, n_kv_heads):
    bsz, seqlen, dim = x.shape
    head_dim = dim // n_heads
    n_rep = n_heads // n_kv_heads

    # projections (tiled Pallas matmuls)
    x2d = x.reshape(bsz * seqlen, dim)
    xq = linear(x2d, wq).reshape(bsz, seqlen, n_heads, head_dim)
    xk = linear(x2d, wk).reshape(bsz, seqlen, n_kv_heads, head_dim)
    xv = linear(x2d, wv).reshape(bsz, seqlen, n_kv_heads, head_dim)

    # head-major layout for RoPE / attention; only the current chunk is transposed
    # (the cache itself is stored head-major, so no cache-sized transpose traffic).
    # TODO(synk): emit head-major layout directly from the projection out_specs to drop these.
    q_hm = xq.transpose(0, 2, 1, 3)          # (B, H,  S, Dh)
    k_hm = xk.transpose(0, 2, 1, 3)          # (B, KH, S, Dh)
    v_hm = xv.transpose(0, 2, 1, 3)          # (B, KH, S, Dh)

    q_hm = apply_rotary_emb(q_hm, cos_full, sin_full, rot)
    k_hm = apply_rotary_emb(k_hm, cos_full, sin_full, rot)

    # persistent KV cache (passed in, not re-zeroed): write only the new chunk.
    # TODO(synk): use jit donation / input_output_aliases to make the cache update truly in-place.
    cache_k = lax.dynamic_update_slice(cache_k, k_hm.astype(cache_k.dtype),
                                       (0, 0, start_pos, 0))
    cache_v = lax.dynamic_update_slice(cache_v, v_hm.astype(cache_v.dtype),
                                       (0, 0, start_pos, 0))
    kv_len = start_pos + seqlen
    keys = cache_k[:bsz, :, :kv_len]         # (B, KH, T, Dh) -- no transpose needed
    values = cache_v[:bsz, :, :kv_len]

    # GQA: the n_rep query heads of a KV head share one K/V stream and one score matmul.
    q_g = q_hm.reshape(bsz, n_kv_heads, n_rep * seqlen, head_dim)
    o_g = flash_attention(q_g, keys.astype(q_g.dtype), values.astype(q_g.dtype),
                          start_pos=start_pos, seqlen=seqlen)

    o = o_g.reshape(bsz, n_kv_heads, n_rep, seqlen, head_dim)
    o = o.transpose(0, 3, 1, 2, 4).reshape(bsz * seqlen, n_heads * head_dim)
    out = linear(o, wo).reshape(bsz, seqlen, dim)
    return out, cache_k, cache_v


# ---------------------------------------------------------------------------
# Pure-JAX reference (same math, no Pallas), for start_pos == 0
# ---------------------------------------------------------------------------

def reference(x, cos_h, sin_h, wq, wk, wv, wo, n_heads, n_kv_heads):
    B, S, dim = x.shape
    Dh = dim // n_heads
    n_rep = n_heads // n_kv_heads
    xq = (x @ wq.T).reshape(B, S, n_heads, Dh)
    xk = (x @ wk.T).reshape(B, S, n_kv_heads, Dh)
    xv = (x @ wv.T).reshape(B, S, n_kv_heads, Dh)

    def rope(t):
        tp = t.reshape(*t.shape[:-1], -1, 2)
        te, to = tp[..., 0], tp[..., 1]
        c = cos_h[None, :, None, :]
        s = sin_h[None, :, None, :]
        return jnp.stack([te * c - to * s, te * s + to * c], -1).reshape(t.shape)

    xq, xk = rope(xq), rope(xk)
    keys = jnp.repeat(xk, n_rep, axis=2)
    values = jnp.repeat(xv, n_rep, axis=2)
    q = xq.transpose(0, 2, 1, 3)
    k = keys.transpose(0, 2, 1, 3)
    v = values.transpose(0, 2, 1, 3)
    mask = jnp.triu(jnp.full((S, S), -jnp.inf, jnp.float32), k=1)
    scores = (q @ k.transpose(0, 1, 3, 2)) / math.sqrt(Dh) + mask
    p = jax.nn.softmax(scores.astype(jnp.float32), axis=-1)
    out = (p @ v).transpose(0, 2, 1, 3).reshape(B, S, -1)
    return out @ wo.T


# ---------------------------------------------------------------------------

if __name__ == "__main__":
    # small config consistent with ModelArgs (dim / n_heads / n_kv_heads), head_dim = 128
    dim, n_heads, n_kv_heads = 512, 4, 2
    bsz, seqlen, start_pos = 2, 8, 0
    max_batch_size, max_seq_len = 4, 16
    head_dim = dim // n_heads

    key = jax.random.PRNGKey(0)
    kx, kq, kk, kv, ko = jax.random.split(key, 5)
    x = jax.random.normal(kx, (bsz, seqlen, dim), dtype=jnp.float32)
    wq = 0.02 * jax.random.normal(kq, (n_heads * head_dim, dim), jnp.float32)
    wk = 0.02 * jax.random.normal(kk, (n_kv_heads * head_dim, dim), jnp.float32)
    wv = 0.02 * jax.random.normal(kv, (n_kv_heads * head_dim, dim), jnp.float32)
    wo = 0.02 * jax.random.normal(ko, (dim, n_heads * head_dim), jnp.float32)

    # freqs_cis as lane-dense cos/sin (value repeated for the real/imag lane of each pair),
    # matching precompute_freqs_cis sliced at [start_pos : start_pos + seqlen]
    theta = 10000.0
    freqs = 1.0 / (theta ** (jnp.arange(0, head_dim, 2, dtype=jnp.float32) / head_dim))
    t_pos = jnp.arange(start_pos, start_pos + seqlen, dtype=jnp.float32)
    ang = jnp.outer(t_pos, freqs)                     # (S, Dh // 2)
    cos_h, sin_h = jnp.cos(ang), jnp.sin(ang)
    cos_full = jnp.repeat(cos_h, 2, axis=-1)          # (S, Dh)
    sin_full = jnp.repeat(sin_h, 2, axis=-1)

    # constant pair-swap matrix for the interleaved rotary rotation
    even = jnp.arange(0, head_dim, 2)
    rot = jnp.zeros((head_dim, head_dim), jnp.float32)
    rot = rot.at[even + 1, even].set(-1.0)            # (x @ R)[2i]   = -x[2i+1]
    rot = rot.at[even, even + 1].set(1.0)             # (x @ R)[2i+1] =  x[2i]

    # persistent head-major KV cache, created ONCE (not per call)
    cache_k = jnp.zeros((max_batch_size, n_kv_heads, max_seq_len, head_dim), x.dtype)
    cache_v = jnp.zeros((max_batch_size, n_kv_heads, max_seq_len, head_dim), x.dtype)

    out, cache_k, cache_v = attention_forward(
        x, start_pos, cos_full, sin_full, rot, cache_k, cache_v, wq, wk, wv, wo,
        n_heads=n_heads, n_kv_heads=n_kv_heads)
    out = jax.block_until_ready(out)

    ref = reference(x, cos_h, sin_h, wq, wk, wv, wo, n_heads, n_kv_heads)
    assert out.shape == (bsz, seqlen, dim)
    assert jnp.allclose(out, ref, atol=2e-3, rtol=2e-3), "mismatch vs reference"
    print("KERNEL_OK")
</pallas_src>

<mosaic_0001>
module attributes {stable_mosaic.version = 11 : i64} {
  func.func @_linear_kernel(%arg0: i32, %arg1: i32, %arg2: i32, %arg3: memref<16x512xf32, #tpu.memory_space<vmem>>, %arg4: memref<256x512xf32, #tpu.memory_space<vmem>>, %arg5: memref<16x256xf32, #tpu.memory_space<vmem>>, %arg6: memref<16x256xf32, #tpu.memory_space<vmem>>) attributes {dimension_semantics = [#tpu.dimension_semantics<parallel>, #tpu.dimension_semantics<parallel>, #tpu.dimension_semantics<arbitrary>], iteration_bounds = array<i64: 1, 2, 1>, scalar_prefetch = 0 : i64, scratch_operands = 1 : i64, tpu.core_type = #tpu.core_type<tc>, window_params = [{transform_indices = @transform_0, window_bounds = array<i64: 16, 512>}, {transform_indices = @transform_1, window_bounds = array<i64: 256, 512>}, {transform_indices = @transform_2, window_bounds = array<i64: 16, 256>}]} {
    %c0_i32 = arith.constant 0 : i32
    %0 = arith.cmpi eq, %arg2, %c0_i32 : i32
    %1 = arith.extui %0 : i1 to i32
    %c0_i32_0 = arith.constant 0 : i32
    %2 = arith.cmpi ne, %1, %c0_i32_0 : i32
    scf.if %2 {
      %cst_10 = arith.constant 0.000000e+00 : f32
      %12 = vector.broadcast %cst_10 : f32 to vector<16x256xf32>
      %c0_11 = arith.constant 0 : index
      %c0_12 = arith.constant 0 : index
      %13 = vector.load %arg6[%c0_11, %c0_12] : memref<16x256xf32, #tpu.memory_space<vmem>>, vector<16x256xf32>
      tpu.vector_store %arg6[%c0_11, %c0_12], %12 {strides = array<i32>} : memref<16x256xf32, #tpu.memory_space<vmem>>, vector<16x256xf32>,
    } else {
    }
    %c0 = arith.constant 0 : index
    %c0_1 = arith.constant 0 : index
    %3 = vector.load %arg6[%c0, %c0_1] : memref<16x256xf32, #tpu.memory_space<vmem>>, vector<16x256xf32>
    %c0_2 = arith.constant 0 : index
    %c0_3 = arith.constant 0 : index
    %4 = vector.load %arg3[%c0_2, %c0_3] : memref<16x512xf32, #tpu.memory_space<vmem>>, vector<16x512xf32>
    %c0_4 = arith.constant 0 : index
    %c0_5 = arith.constant 0 : index
    %5 = vector.load %arg4[%c0_4, %c0_5] : memref<256x512xf32, #tpu.memory_space<vmem>>, vector<256x512xf32>
    %cst = arith.constant dense<0.000000e+00> : vector<16x256xf32>
    %6 = tpu.matmul %4, %5, %cst {dimension_numbers = #tpu.dot_dimension_numbers<[1], [1], [0], [0], [0, 0, 1, 0], [], []>} : vector<16x512xf32>, vector<256x512xf32>, vector<16x256xf32> -> vector<16x256xf32>
    %7 = arith.addf %3, %6 : vector<16x256xf32>
    %c0_6 = arith.constant 0 : index
    %c0_7 = arith.constant 0 : index
    %8 = vector.load %arg6[%c0_6, %c0_7] : memref<16x256xf32, #tpu.memory_space<vmem>>, vector<16x256xf32>
    tpu.vector_store %arg6[%c0_6, %c0_7], %7 {strides = array<i32>} : memref<16x256xf32, #tpu.memory_space<vmem>>, vector<16x256xf32>,
    %c0_i32_8 = arith.constant 0 : i32
    %9 = arith.cmpi eq, %arg2, %c0_i32_8 : i32
    %10 = arith.extui %9 : i1 to i32
    %c0_i32_9 = arith.constant 0 : i32
    %11 = arith.cmpi ne, %10, %c0_i32_9 : i32
    scf.if %11 {
      %c0_10 = arith.constant 0 : index
      %c0_11 = arith.constant 0 : index
      %12 = vector.load %arg6[%c0_10, %c0_11] : memref<16x256xf32, #tpu.memory_space<vmem>>, vector<16x256xf32>
      %c0_12 = arith.constant 0 : index
      %c0_13 = arith.constant 0 : index
      %13 = vector.load %arg5[%c0_12, %c0_13] : memref<16x256xf32, #tpu.memory_space<vmem>>, vector<16x256xf32>
      tpu.vector_store %arg5[%c0_12, %c0_13], %12 {strides = array<i32>} : memref<16x256xf32, #tpu.memory_space<vmem>>, vector<16x256xf32>,
    } else {
    }
    return
  }
  func.func @transform_0(%arg0: i32, %arg1: i32, %arg2: i32) -> (i32, i32) {
    %c0_i32 = arith.constant 0 : i32
    return %arg0, %arg2 : i32, i32
  }
  func.func @transform_1(%arg0: i32, %arg1: i32, %arg2: i32) -> (i32, i32) {
    %c0_i32 = arith.constant 0 : i32
    return %arg1, %arg2 : i32, i32
  }
  func.func @transform_2(%arg0: i32, %arg1: i32, %arg2: i32) -> (i32, i32) {
    %c0_i32 = arith.constant 0 : i32
    return %arg0, %arg1 : i32, i32
  }
}

</mosaic_0001>

<llo_original>
// kernel: tpu_custom_call.1
$region0: #{tpu_custom_call.1}
  #allocation0 [shape = 'u32[]', space=smem, size = 0x4, offset = 0x4, fixed_abs, tag = 'smem constant byte address 0x4 - core index']
  #allocation1 [shape = 'u32[72,128]{1,0:T(1,128)}', space=vmem, size = 0x9000, scoped, tag = 'internal scratch']
  #allocation2 [shape = 'f32[16,256]{1,0:T(8,128)}', space=vmem, size = 0x4000, scoped, tag = 'scratch operand']
  %s0 = inlined_call_operand.hbm [shape: f32[16,512], index: 0, kind: input, shape index: {}]
  %s1 = inlined_call_operand.hbm [shape: f32[512,512], index: 1, kind: input, shape index: {}]
  %s2 = inlined_call_operand.hbm [shape: f32[16,512], index: 2, kind: output, shape index: {}]
  %s3 = sld [smem:[#allocation0]]
  $region57: #{tpu_custom_call.1} parent=0
    _
  %s5 = ssub.s32 1, %s3
  %s6 = scalar_select 0, %s5, %s3
  $region1: #{tpu_custom_call.1} parent=0
    #allocation3 [shape = 'u8[32768]{0}', space=vmem, size = 0x8000, scoped, tag = 'input window, operand 0, single buffered']
    #allocation4 [shape = 's32[2]{0}', space=sflag, size = 0x8, scoped, tag = 'scoped memory for tpu_custom_call.1']
    #allocation5 [shape = 's32[2]{0}', space=sflag, size = 0x8, scoped, tag = 'scoped memory for tpu_custom_call.1']
    #allocation6 [shape = 'u8[1048576]{0}', space=vmem, size = 0x100000, scoped, tag = 'input window, operand 1']
    #allocation7 [shape = 's32[2]{0}', space=sflag, size = 0x8, scoped, tag = 'scoped memory for tpu_custom_call.1']
    #allocation8 [shape = 'u8[32768]{0}', space=vmem, size = 0x8000, scoped, tag = 'output window, operand 0']
    %7 = vsyncpa [#allocation4], 0
    %8 = vsyncpa [#allocation7], 0
    %s9 = scalar_lea.sflag [#allocation7], 1
    %10 = vsyncpa %s9, 0
    %11 = vsyncpa [#allocation5], 0
    %s12 = scalar_lea.sflag [#allocation5], 1
    %13 = vsyncpa %s12, 0
    loop: start=0, step=1, limit=4
    $region2: #{tpu_custom_call.1} parent=1 // loop_pre_header
      _
    $region3: #{tpu_custom_call.1} parent=1 // loop_header
      %s15 = sphi 0, %s19
      %p16 = scmp.ge.s32.totalorder %s15, 4
      %s22 = sphi 0, %s41
      %s23 = sphi 0, %s37
      %s24 = sphi 0, %s33
      %s25 = sphi 0, %s22
      %s26 = sphi 0, %s23
      %s27 = sphi 0, %s24
      %s28 = sphi 0, %s25
      %s29 = sphi 0, %s26
      %s30 = sphi 0, %s27
      %s46 = sphi 0, %s48
      %s49 = sphi 0, %s46
      %s50 = sphi 0, %s49
      %s66 = sphi 0, %s50
      %s74 = sphi 0, %s76
      %s77 = sphi 0, %s74
      %s78 = sphi 0, %s77
      %s94 = sphi 0, %s78
      %s102 = sphi 0, %s104
      %s105 = sphi 0, %s102
      %s106 = sphi 0, %s105
      %s122 = sphi 0, %s106
    $region4: #{tpu_custom_call.1} parent=1 // loop_header_branch
      %18 = sbr.rel (%p16) target = $region8
    $region5: #{tpu_custom_call.1} parent=1 // loop_body
      %s20 = ssub.s32 %s15, 1
      %s21 = ssub.s32 %s15, 2
      %s31 = sadd.s32 1, %s24
      %p32 = scmp.ge.s32.totalorder %s31, 1
      %s33 = scalar_select %p32, 0, %s31
      %s34 = sadd.s32 1, %s23
      %s35 = scalar_select %p32, %s34, %s23
      %p36 = scmp.ge.s32.totalorder %s35, 2
      %s37 = scalar_select %p36, 0, %s35
      %s38 = sadd.s32 1, %s22
      %s39 = scalar_select %p36, %s38, %s22
      %p40 = scmp.ge.s32.totalorder %s39, 1
      %s41 = scalar_select %p40, 0, %s39
      %s42 = ssub.s32 %s22, %s41
      %s43 = ssub.s32 %s24, %s33
      %s44 = sor.u32 %s42, %s43
      %p45 = scmp.eq.s32.totalorder %s44, 0
      %s47 = sadd.s32 %s46, 1
      %s48 = scalar_select %p45, %s46, %s47
      %p51 = pneg %p45
      %p52 = scmp.eq.s32.totalorder %s15, 1
      %p53 = por %p51, %p52
      %p54 = scmp.ne.s32.totalorder %s46, %s49
      %p55 = scmp.eq.s32.totalorder %s15, 0
      %p56 = por %p54, %p55
      %p57 = scmp.ne.s32.totalorder %s46, %s49
      %p58 = scmp.eq.s32.totalorder %s20, 1
      %p59 = por %p57, %p58
      %p60 = scmp.ne.s32.totalorder %s49, %s50
      %p61 = scmp.eq.s32.totalorder %s20, 0
      %p62 = por %p60, %p61
      %p63 = scmp.ne.s32.totalorder %s49, %s50
      %p64 = scmp.eq.s32.totalorder %s21, 1
      %p65 = por %p63, %p64
      %p67 = scmp.ne.s32.totalorder %s50, %s66
      %p68 = scmp.eq.s32.totalorder %s21, 0
      %p69 = por %p67, %p68
      %s70 = ssub.s32 %s23, %s37
      %s71 = ssub.s32 %s24, %s33
      %s72 = sor.u32 %s70, %s71
      %p73 = scmp.eq.s32.totalorder %s72, 0
      %s75 = sadd.s32 %s74, 1
      %s76 = scalar_select %p73, %s74, %s75
      %p79 = pneg %p73
      %p80 = scmp.eq.s32.totalorder %s15, 1
      %p81 = por %p79, %p80
      %p82 = scmp.ne.s32.totalorder %s74, %s77
      %p83 = scmp.eq.s32.totalorder %s15, 0
      %p84 = por %p82, %p83
      %p85 = scmp.ne.s32.totalorder %s74, %s77
      %p86 = scmp.eq.s32.totalorder %s20, 1
      %p87 = por %p85, %p86
      %p88 = scmp.ne.s32.totalorder %s77, %s78
      %p89 = scmp.eq.s32.totalorder %s20, 0
      %p90 = por %p88, %p89
      %p91 = scmp.ne.s32.totalorder %s77, %s78
      %p92 = scmp.eq.s32.totalorder %s21, 1
      %p93 = por %p91, %p92
      %p95 = scmp.ne.s32.totalorder %s78, %s94
      %p96 = scmp.eq.s32.totalorder %s21, 0
      %p97 = por %p95, %p96
      %s98 = ssub.s32 %s22, %s41
      %s99 = ssub.s32 %s23, %s37
      %s100 = sor.u32 %s98, %s99
      %p101 = scmp.eq.s32.totalorder %s100, 0
      %s103 = sadd.s32 %s102, 1
      %s104 = scalar_select %p101, %s102, %s103
      %p107 = pneg %p101
      %p108 = scmp.eq.s32.totalorder %s15, 1
      %p109 = por %p107, %p108
      %p110 = scmp.ne.s32.totalorder %s102, %s105
      %p111 = scmp.eq.s32.totalorder %s15, 0
      %p112 = por %p110, %p111
      %p113 = scmp.ne.s32.totalorder %s102, %s105
      %p114 = scmp.eq.s32.totalorder %s20, 1
      %p115 = por %p113, %p114
      %p116 = scmp.ne.s32.totalorder %s105, %s106
      %p117 = scmp.eq.s32.totalorder %s20, 0
      %p118 = por %p116, %p117
      %p119 = scmp.ne.s32.totalorder %s105, %s106
      %p120 = scmp.eq.s32.totalorder %s21, 1
      %p121 = por %p119, %p120
      %p123 = scmp.ne.s32.totalorder %s106, %s122
      %p124 = scmp.eq.s32.totalorder %s21, 0
      %p125 = por %p123, %p124
      %p126 = scmp.le.s32.totalorder 1, %s15
      %p127 = scmp.lt.s32.totalorder %s15, 3
      %p128 = pnand %p126, %p127
      %p129 = pneg %p128
      // Predicated region
      $region9: #{tpu_custom_call.1} parent=5 // pred_check
        _
      $region10: #{tpu_custom_call.1} parent=5 // pred_check_branch
        %131 = sbr.rel (%p128) target = $region12
      $region11: #{tpu_custom_call.1} parent=5 // pred_region
        %s132 = ssub.s32 %s15, 1
        // Predicated region
        $region13: #{tpu_custom_call.1} parent=11 // pred_check
          %p133 = pneg %p62
        $region14: #{tpu_custom_call.1} parent=11 // pred_check_branch
          %135 = sbr.rel (%p133) target = $region16
        $region15: #{tpu_custom_call.1} parent=11 // pred_region
          %s136 = smul.u32 2, %s25
          %s137 = smul.u32 4, %s27
          %139 = vsyncadd [#allocation4], 0
          %s140 = smul.addr %s136, 4
          %s141 = sadd.s32 %s137, %s140
          %s142 = smul.addr %s141, 8
          %s143 = scalar_lea.hbm %s0, %s142
          %s144 = sshll.u32 %s143, 4
          %s145 = int_to_ptr.hbm [resolvable:$true] %s144
          %s146 = sshll.u32 [#allocation3], 4
          %s147 = int_to_ptr.vmem [resolvable:$true] %s146
          %152 = dma.hbm_to_vmem [thread:$0]  %s145, 1024, %s147, [#allocation4], 512, 512, 32
        $region16: #{tpu_custom_call.1} parent=11 // pred_fallthru
          _
      $region12: #{tpu_custom_call.1} parent=5 // pred_fallthru
        _
      %p153 = scmp.lt.s32.totalorder %s15, 2
      // Predicated region
      $region17: #{tpu_custom_call.1} parent=5 // pred_check
        %p154 = pneg %p153
      $region18: #{tpu_custom_call.1} parent=5 // pred_check_branch
        %156 = sbr.rel (%p154) target = $region20
      $region19: #{tpu_custom_call.1} parent=5 // pred_region
        // Predicated region
        $region21: #{tpu_custom_call.1} parent=19 // pred_check
          %p157 = pneg %p84
        $region22: #{tpu_custom_call.1} parent=19 // pred_check_branch
          %159 = sbr.rel (%p157) target = $region24
        $region23: #{tpu_custom_call.1} parent=19 // pred_region
          %s160 = sand.u32 %s74, 1
          %s161 = scalar_lea.sflag [#allocation7], %s160
          %s162 = sand.u32 %s74, 1
          %s163 = smul.addr %s162, 1024
          %s164 = scalar_lea.vmem [#allocation6], %s163
          %s165 = smul.u32 32, %s23
          %s166 = smul.u32 4, %s24
          %168 = vsyncadd %s161, 0
          %s169 = smul.addr %s165, 4
          %s170 = sadd.s32 %s166, %s169
          %s171 = smul.addr %s170, 8
          %s172 = scalar_lea.hbm %s1, %s171
          %s173 = sshll.u32 %s172, 4
          %s174 = int_to_ptr.hbm [resolvable:$true] %s173
          %s175 = sshll.u32 %s164, 4
          %s176 = int_to_ptr.vmem [resolvable:$true] %s175
          %181 = dma.hbm_to_vmem [thread:$0]  %s174, 16384, %s176, %s161, 512, 512, 32
        $region24: #{tpu_custom_call.1} parent=19 // pred_fallthru
          _
      $region20: #{tpu_custom_call.1} parent=5 // pred_fallthru
        _
      %p182 = scmp.le.s32.totalorder 1, %s15
      %p183 = scmp.lt.s32.totalorder %s15, 3
      %p184 = pnand %p182, %p183
      %p185 = pneg %p184
      // Predicated region
      $region25: #{tpu_custom_call.1} parent=5 // pred_check
        _
      $region26: #{tpu_custom_call.1} parent=5 // pred_check_branch
        %187 = sbr.rel (%p184) target = $region28
      $region27: #{tpu_custom_call.1} parent=5 // pred_region
        %s188 = ssub.s32 %s15, 1
        // Predicated region
        $region29: #{tpu_custom_call.1} parent=27 // pred_check
          %p189 = pneg %p62
        $region30: #{tpu_custom_call.1} parent=27 // pred_check_branch
          %191 = sbr.rel (%p189) target = $region32
        $region31: #{tpu_custom_call.1} parent=27 // pred_region
          %193 = dma.done [#allocation4], 1024
        $region32: #{tpu_custom_call.1} parent=27 // pred_fallthru
          _
        %s194 = sand.u32 %s77, 1
        %s195 = scalar_lea.sflag [#allocation7], %s194
        %s196 = sand.u32 %s77, 1
        %s197 = smul.addr %s196, 1024
        %s198 = scalar_lea.vmem [#allocation6], %s197
        // Predicated region
        $region33: #{tpu_custom_call.1} parent=27 // pred_check
          %p199 = pneg %p90
        $region34: #{tpu_custom_call.1} parent=27 // pred_check_branch
          %201 = sbr.rel (%p199) target = $region36
        $region35: #{tpu_custom_call.1} parent=27 // pred_region
          %203 = dma.done %s195, 16384
        $region36: #{tpu_custom_call.1} parent=27 // pred_fallthru
          _
        %p204 = pneg %p62
        %p205 = pneg %p59
        %s206 = sand.u32 %s77, 1
        %s207 = scalar_lea.sflag [#allocation7], %s206
        %s208 = sand.u32 %s77, 1
        %s209 = smul.addr %s208, 1024
        %s210 = scalar_lea.vmem [#allocation6], %s209
        %p211 = pneg %p90
        %p212 = pneg %p87
        %p213 = pneg %p118
        %p214 = pneg %p115
        %s215 = sand.u32 %s105, 1
        %s216 = scalar_lea.sflag [#allocation5], %s215
        %s217 = sand.u32 %s105, 1
        %s218 = smul.addr %s217, 32
        %s219 = scalar_lea.vmem [#allocation8], %s218
        %s220 = smul.u32 2, %s25
        %s221 = smul.u32 4, %s27
        %s222 = smul.u32 32, %s26
        %s223 = smul.u32 4, %s27
        %s224 = smul.u32 2, %s25
        %s225 = smul.u32 2, %s26
        %p226 = scmp.eq.s32.totalorder %s27, 0
        // Predicated region
        $region37: #{tpu_custom_call.1} parent=27 // pred_check
          %p227 = pneg %p226
        $region38: #{tpu_custom_call.1} parent=27 // pred_check_branch
          %229 = sbr.rel (%p227) target = $region40
        $region39: #{tpu_custom_call.1} parent=27 // pred_region
          %230 = vst [vmem:[#allocation2] sm:$0xff] 0.0
          %231 = vst [vmem:[#allocation2 + $0x8] sm:$0xff] 0.0
          %232 = vst [vmem:[#allocation2 + $0x10] sm:$0xff] 0.0
          %233 = vst [vmem:[#allocation2 + $0x18] sm:$0xff] 0.0
        $region40: #{tpu_custom_call.1} parent=27 // pred_fallthru
          _
        %v234 = vld [vmem:[#allocation2] sm:$0xff]
        %v235 = vld [vmem:[#allocation2 + $0x8] sm:$0xff]
        %v236 = vld [vmem:[#allocation2 + $0x10] sm:$0xff]
        %v237 = vld [vmem:[#allocation2 + $0x18] sm:$0xff]
        %v238 = vld [vmem:[#allocation3] sm:$0xff]
        %v239 = vld [vmem:[#allocation3 + $0x8] sm:$0xff]
        %v240 = vld [vmem:[#allocation3 + $0x10] sm:$0xff]
        %v241 = vld [vmem:[#allocation3 + $0x18] sm:$0xff]
        %v242 = vld [vmem:[#allocation3 + $0x20] sm:$0xff]
        %v243 = vld [vmem:[#allocation3 + $0x28] sm:$0xff]
        %v244 = vld [vmem:[#allocation3 + $0x30] sm:$0xff]
        %v245 = vld [vmem:[#allocation3 + $0x38] sm:$0xff]
        %v246 = vld [vmem:[%s198] sm:$0xff]
        %v247 = vld [vmem:[%s198 + $0x8] sm:$0xff]
        %v248 = vld [vmem:[%s198 + $0x10] sm:$0xff]
        %v249 = vld [vmem:[%s198 + $0x18] sm:$0xff]
        %v250 = vld [vmem:[%s198 + $0x20] sm:$0xff]
        %v251 = vld [vmem:[%s198 + $0x28] sm:$0xff]
        %v252 = vld [vmem:[%s198 + $0x30] sm:$0xff]
        %v253 = vld [vmem:[%s198 + $0x38] sm:$0xff]
        %v254 = vld [vmem:[%s198 + $0x40] sm:$0xff]
        %v255 = vld [vmem:[%s198 + $0x48] sm:$0xff]
        %v256 = vld [vmem:[%s198 + $0x50] sm:$0xff]
        %v257 = vld [vmem:[%s198 + $0x58] sm:$0xff]
        %v258 = vld [vmem:[%s198 + $0x60] sm:$0xff]
        %v259 = vld [vmem:[%s198 + $0x68] sm:$0xff]
        %v260 = vld [vmem:[%s198 + $0x70] sm:$0xff]
        %v261 = vld [vmem:[%s198 + $0x78] sm:$0xff]
        %v262 = vld [vmem:[%s198 + $0x80] sm:$0xff]
        %v263 = vld [vmem:[%s198 + $0x88] sm:$0xff]
        %v264 = vld [vmem:[%s198 + $0x90] sm:$0xff]
        %v265 = vld [vmem:[%s198 + $0x98] sm:$0xff]
        %v266 = vld [vmem:[%s198 + $0xa0] sm:$0xff]
        %v267 = vld [vmem:[%s198 + $0xa8] sm:$0xff]
        %v268 = vld [vmem:[%s198 + $0xb0] sm:$0xff]
        %v269 = vld [vmem:[%s198 + $0xb8] sm:$0xff]
        %v270 = vld [vmem:[%s198 + $0xc0] sm:$0xff]
        %v271 = vld [vmem:[%s198 + $0xc8] sm:$0xff]
        %v272 = vld [vmem:[%s198 + $0xd0] sm:$0xff]
        %v273 = vld [vmem:[%s198 + $0xd8] sm:$0xff]
        %v274 = vld [vmem:[%s198 + $0xe0] sm:$0xff]
        %v275 = vld [vmem:[%s198 + $0xe8] sm:$0xff]
        %v276 = vld [vmem:[%s198 + $0xf0] sm:$0xff]
        %v277 = vld [vmem:[%s198 + $0xf8] sm:$0xff]
        %v278 = vld [vmem:[%s198 + $0x100] sm:$0xff]
        %v279 = vld [vmem:[%s198 + $0x108] sm:$0xff]
        %v280 = vld [vmem:[%s198 + $0x110] sm:$0xff]
        %v281 = vld [vmem:[%s198 + $0x118] sm:$0xff]
        %v282 = vld [vmem:[%s198 + $0x120] sm:$0xff]
        %v283 = vld [vmem:[%s198 + $0x128] sm:$0xff]
        %v284 = vld [vmem:[%s198 + $0x130] sm:$0xff]
        %v285 = vld [vmem:[%s198 + $0x138] sm:$0xff]
        %v286 = vld [vmem:[%s198 + $0x140] sm:$0xff]
        %v287 = vld [vmem:[%s198 + $0x148] sm:$0xff]
        %v288 = vld [vmem:[%s198 + $0x150] sm:$0xff]
        %v289 = vld [vmem:[%s198 + $0x158] sm:$0xff]
        %v290 = vld [vmem:[%s198 + $0x160] sm:$0xff]
        %v291 = vld [vmem:[%s198 + $0x168] sm:$0xff]
        %v292 = vld [vmem:[%s198 + $0x170] sm:$0xff]
        %v293 = vld [vmem:[%s198 + $0x178] sm:$0xff]
        %v294 = vld [vmem:[%s198 + $0x180] sm:$0xff]
        %v295 = vld [vmem:[%s198 + $0x188] sm:$0xff]
        %v296 = vld [vmem:[%s198 + $0x190] sm:$0xff]
        %v297 = vld [vmem:[%s198 + $0x198] sm:$0xff]
        %v298 = vld [vmem:[%s198 + $0x1a0] sm:$0xff]
        %v299 = vld [vmem:[%s198 + $0x1a8] sm:$0xff]
        %v300 = vld [vmem:[%s198 + $0x1b0] sm:$0xff]
        %v301 = vld [vmem:[%s198 + $0x1b8] sm:$0xff]
        %v302 = vld [vmem:[%s198 + $0x1c0] sm:$0xff]
        %v303 = vld [vmem:[%s198 + $0x1c8] sm:$0xff]
        %v304 = vld [vmem:[%s198 + $0x1d0] sm:$0xff]
        %v305 = vld [vmem:[%s198 + $0x1d8] sm:$0xff]
        %v306 = vld [vmem:[%s198 + $0x1e0] sm:$0xff]
        %v307 = vld [vmem:[%s198 + $0x1e8] sm:$0xff]
        %v308 = vld [vmem:[%s198 + $0x1f0] sm:$0xff]
        %v309 = vld [vmem:[%s198 + $0x1f8] sm:$0xff]
        %v310 = vld [vmem:[%s198 + $0x200] sm:$0xff]
        %v311 = vld [vmem:[%s198 + $0x208] sm:$0xff]
        %v312 = vld [vmem:[%s198 + $0x210] sm:$0xff]
        %v313 = vld [vmem:[%s198 + $0x218] sm:$0xff]
        %v314 = vld [vmem:[%s198 + $0x220] sm:$0xff]
        %v315 = vld [vmem:[%s198 + $0x228] sm:$0xff]
        %v316 = vld [vmem:[%s198 + $0x230] sm:$0xff]
        %v317 = vld [vmem:[%s198 + $0x238] sm:$0xff]
        %v318 = vld [vmem:[%s198 + $0x240] sm:$0xff]
        %v319 = vld [vmem:[%s198 + $0x248] sm:$0xff]
        %v320 = vld [vmem:[%s198 + $0x250] sm:$0xff]
        %v321 = vld [vmem:[%s198 + $0x258] sm:$0xff]
        %v322 = vld [vmem:[%s198 + $0x260] sm:$0xff]
        %v323 = vld [vmem:[%s198 + $0x268] sm:$0xff]
        %v324 = vld [vmem:[%s198 + $0x270] sm:$0xff]
        %v325 = vld [vmem:[%s198 + $0x278] sm:$0xff]
        %v326 = vld [vmem:[%s198 + $0x280] sm:$0xff]
        %v327 = vld [vmem:[%s198 + $0x288] sm:$0xff]
        %v328 = vld [vmem:[%s198 + $0x290] sm:$0xff]
        %v329 = vld [vmem:[%s198 + $0x298] sm:$0xff]
        %v330 = vld [vmem:[%s198 + $0x2a0] sm:$0xff]
        %v331 = vld [vmem:[%s198 + $0x2a8] sm:$0xff]
        %v332 = vld [vmem:[%s198 + $0x2b0] sm:$0xff]
        %v333 = vld [vmem:[%s198 + $0x2b8] sm:$0xff]
        %v334 = vld [vmem:[%s198 + $0x2c0] sm:$0xff]
        %v335 = vld [vmem:[%s198 + $0x2c8] sm:$0xff]
        %v336 = vld [vmem:[%s198 + $0x2d0] sm:$0xff]
        %v337 = vld [vmem:[%s198 + $0x2d8] sm:$0xff]
        %v338 = vld [vmem:[%s198 + $0x2e0] sm:$0xff]
        %v339 = vld [vmem:[%s198 + $0x2e8] sm:$0xff]
        %v340 = vld [vmem:[%s198 + $0x2f0] sm:$0xff]
        %v341 = vld [vmem:[%s198 + $0x2f8] sm:$0xff]
        %v342 = vld [vmem:[%s198 + $0x300] sm:$0xff]
        %v343 = vld [vmem:[%s198 + $0x308] sm:$0xff]
        %v344 = vld [vmem:[%s198 + $0x310] sm:$0xff]
        %v345 = vld [vmem:[%s198 + $0x318] sm:$0xff]
        %v346 = vld [vmem:[%s198 + $0x320] sm:$0xff]
        %v347 = vld [vmem:[%s198 + $0x328] sm:$0xff]
        %v348 = vld [vmem:[%s198 + $0x330] sm:$0xff]
        %v349 = vld [vmem:[%s198 + $0x338] sm:$0xff]
        %v350 = vld [vmem:[%s198 + $0x340] sm:$0xff]
        %v351 = vld [vmem:[%s198 + $0x348] sm:$0xff]
        %v352 = vld [vmem:[%s198 + $0x350] sm:$0xff]
        %v353 = vld [vmem:[%s198 + $0x358] sm:$0xff]
        %v354 = vld [vmem:[%s198 + $0x360] sm:$0xff]
        %v355 = vld [vmem:[%s198 + $0x368] sm:$0xff]
        %v356 = vld [vmem:[%s198 + $0x370] sm:$0xff]
        %v357 = vld [vmem:[%s198 + $0x378] sm:$0xff]
        %v358 = vld [vmem:[%s198 + $0x380] sm:$0xff]
        %v359 = vld [vmem:[%s198 + $0x388] sm:$0xff]
        %v360 = vld [vmem:[%s198 + $0x390] sm:$0xff]
        %v361 = vld [vmem:[%s198 + $0x398] sm:$0xff]
        %v362 = vld [vmem:[%s198 + $0x3a0] sm:$0xff]
        %v363 = vld [vmem:[%s198 + $0x3a8] sm:$0xff]
        %v364 = vld [vmem:[%s198 + $0x3b0] sm:$0xff]
        %v365 = vld [vmem:[%s198 + $0x3b8] sm:$0xff]
        %v366 = vld [vmem:[%s198 + $0x3c0] sm:$0xff]
        %v367 = vld [vmem:[%s198 + $0x3c8] sm:$0xff]
        %v368 = vld [vmem:[%s198 + $0x3d0] sm:$0xff]
        %v369 = vld [vmem:[%s198 + $0x3d8] sm:$0xff]
        %v370 = vld [vmem:[%s198 + $0x3e0] sm:$0xff]
        %v371 = vld [vmem:[%s198 + $0x3e8] sm:$0xff]
        %v372 = vld [vmem:[%s198 + $0x3f0] sm:$0xff]
        %v373 = vld [vmem:[%s198 + $0x3f8] sm:$0xff]
        %374 = vmatpush.xpose.msra.mxu0 %v306
        %375 = vmatpush.xpose.msra.mxu0 %v302
        %376 = vmatpush.xpose.msra.mxu0 %v298
        %377 = vmatpush.xpose.msra.mxu0 %v294
        %378 = vmatpush.xpose.msra.mxu0 %v290
        %379 = vmatpush.xpose.msra.mxu0 %v286
        %380 = vmatpush.xpose.msra.mxu0 %v282
        %381 = vmatpush.xpose.msra.mxu0 %v278
        %382 = vmatpush.xpose.msra.mxu0 %v274
        %383 = vmatpush.xpose.msra.mxu0 %v270
        %384 = vmatpush.xpose.msra.mxu0 %v266
        %385 = vmatpush.xpose.msra.mxu0 %v262
        %386 = vmatpush.xpose.msra.mxu0 %v258
        %387 = vmatpush.xpose.msra.mxu0 %v254
        %388 = vmatpush.xpose.msra.mxu0 %v250
        %389 = vmatpush.xpose.msra.mxu0 %v246
        %390 = vmatmul.f32.gmra.mxu0 %v238
        %v391 = vpop.f32.mrf.mxu0
        %v392 = vadd.f32 0.0, %v391
        %393 = vmatmul.f32.gmra.mxu0 %v242
        %v394 = vpop.f32.mrf.mxu0
        %v395 = vadd.f32 0.0, %v394
        %396 = vdwg.mxu0
        %397 = vmatpush.xpose.msra.mxu0 %v307
        %398 = vmatpush.xpose.msra.mxu0 %v303
        %399 = vmatpush.xpose.msra.mxu0 %v299
        %400 = vmatpush.xpose.msra.mxu0 %v295
        %401 = vmatpush.xpose.msra.mxu0 %v291
        %402 = vmatpush.xpose.msra.mxu0 %v287
        %403 = vmatpush.xpose.msra.mxu0 %v283
        %404 = vmatpush.xpose.msra.mxu0 %v279
        %405 = vmatpush.xpose.msra.mxu0 %v275
        %406 = vmatpush.xpose.msra.mxu0 %v271
        %407 = vmatpush.xpose.msra.mxu0 %v267
        %408 = vmatpush.xpose.msra.mxu0 %v263
        %409 = vmatpush.xpose.msra.mxu0 %v259
        %410 = vmatpush.xpose.msra.mxu0 %v255
        %411 = vmatpush.xpose.msra.mxu0 %v251
        %412 = vmatpush.xpose.msra.mxu0 %v247
        %413 = vmatmul.f32.gmra.mxu0 %v239
        %v414 = vpop.f32.mrf.mxu0
        %v415 = vadd.f32 %v392, %v414
        %416 = vmatmul.f32.gmra.mxu0 %v243
        %v417 = vpop.f32.mrf.mxu0
        %v418 = vadd.f32 %v395, %v417
        %419 = vdwg.mxu0
        %420 = vmatpush.xpose.msra.mxu0 %v308
        %421 = vmatpush.xpose.msra.mxu0 %v304
        %422 = vmatpush.xpose.msra.mxu0 %v300
        %423 = vmatpush.xpose.msra.mxu0 %v296
        %424 = vmatpush.xpose.msra.mxu0 %v292
        %425 = vmatpush.xpose.msra.mxu0 %v288
        %426 = vmatpush.xpose.msra.mxu0 %v284
        %427 = vmatpush.xpose.msra.mxu0 %v280
        %428 = vmatpush.xpose.msra.mxu0 %v276
        %429 = vmatpush.xpose.msra.mxu0 %v272
        %430 = vmatpush.xpose.msra.mxu0 %v268
        %431 = vmatpush.xpose.msra.mxu0 %v264
        %432 = vmatpush.xpose.msra.mxu0 %v260
        %433 = vmatpush.xpose.msra.mxu0 %v256
        %434 = vmatpush.xpose.msra.mxu0 %v252
        %435 = vmatpush.xpose.msra.mxu0 %v248
        %436 = vmatmul.f32.gmra.mxu0 %v240
        %v437 = vpop.f32.mrf.mxu0
        %v438 = vadd.f32 %v415, %v437
        %439 = vmatmul.f32.gmra.mxu0 %v244
        %v440 = vpop.f32.mrf.mxu0
        %v441 = vadd.f32 %v418, %v440
        %442 = vdwg.mxu0
        %443 = vmatpush.xpose.msra.mxu0 %v309
        %444 = vmatpush.xpose.msra.mxu0 %v305
        %445 = vmatpush.xpose.msra.mxu0 %v301
        %446 = vmatpush.xpose.msra.mxu0 %v297
        %447 = vmatpush.xpose.msra.mxu0 %v293
        %448 = vmatpush.xpose.msra.mxu0 %v289
        %449 = vmatpush.xpose.msra.mxu0 %v285
        %450 = vmatpush.xpose.msra.mxu0 %v281
        %451 = vmatpush.xpose.msra.mxu0 %v277
        %452 = vmatpush.xpose.msra.mxu0 %v273
        %453 = vmatpush.xpose.msra.mxu0 %v269
        %454 = vmatpush.xpose.msra.mxu0 %v265
        %455 = vmatpush.xpose.msra.mxu0 %v261
        %456 = vmatpush.xpose.msra.mxu0 %v257
        %457 = vmatpush.xpose.msra.mxu0 %v253
        %458 = vmatpush.xpose.msra.mxu0 %v249
        %459 = vmatmul.f32.gmra.mxu0 %v241
        %v460 = vpop.f32.mrf.mxu0
        %v461 = vadd.f32 %v438, %v460
        %462 = vmatmul.f32.gmra.mxu0 %v245
        %v463 = vpop.f32.mrf.mxu0
        %v464 = vadd.f32 %v441, %v463
        %465 = vdwg.mxu0
        %466 = vmatpush.xpose.msra.mxu0 %v370
        %467 = vmatpush.xpose.msra.mxu0 %v366
        %468 = vmatpush.xpose.msra.mxu0 %v362
        %469 = vmatpush.xpose.msra.mxu0 %v358
        %470 = vmatpush.xpose.msra.mxu0 %v354
        %471 = vmatpush.xpose.msra.mxu0 %v350
        %472 = vmatpush.xpose.msra.mxu0 %v346
        %473 = vmatpush.xpose.msra.mxu0 %v342
        %474 = vmatpush.xpose.msra.mxu0 %v338
        %475 = vmatpush.xpose.msra.mxu0 %v334
        %476 = vmatpush.xpose.msra.mxu0 %v330
        %477 = vmatpush.xpose.msra.mxu0 %v326
        %478 = vmatpush.xpose.msra.mxu0 %v322
        %479 = vmatpush.xpose.msra.mxu0 %v318
        %480 = vmatpush.xpose.msra.mxu0 %v314
        %481 = vmatpush.xpose.msra.mxu0 %v310
        %482 = vmatmul.f32.gmra.mxu0 %v238
        %v483 = vpop.f32.mrf.mxu0
        %v484 = vadd.f32 0.0, %v483
        %485 = vmatmul.f32.gmra.mxu0 %v242
        %v486 = vpop.f32.mrf.mxu0
        %v487 = vadd.f32 0.0, %v486
        %488 = vdwg.mxu0
        %489 = vmatpush.xpose.msra.mxu0 %v371
        %490 = vmatpush.xpose.msra.mxu0 %v367
        %491 = vmatpush.xpose.msra.mxu0 %v363
        %492 = vmatpush.xpose.msra.mxu0 %v359
        %493 = vmatpush.xpose.msra.mxu0 %v355
        %494 = vmatpush.xpose.msra.mxu0 %v351
        %495 = vmatpush.xpose.msra.mxu0 %v347
        %496 = vmatpush.xpose.msra.mxu0 %v343
        %497 = vmatpush.xpose.msra.mxu0 %v339
        %498 = vmatpush.xpose.msra.mxu0 %v335
        %499 = vmatpush.xpose.msra.mxu0 %v331
        %500 = vmatpush.xpose.msra.mxu0 %v327
        %501 = vmatpush.xpose.msra.mxu0 %v323
        %502 = vmatpush.xpose.msra.mxu0 %v319
        %503 = vmatpush.xpose.msra.mxu0 %v315
        %504 = vmatpush.xpose.msra.mxu0 %v311
        %505 = vmatmul.f32.gmra.mxu0 %v239
        %v506 = vpop.f32.mrf.mxu0
        %v507 = vadd.f32 %v484, %v506
        %508 = vmatmul.f32.gmra.mxu0 %v243
        %v509 = vpop.f32.mrf.mxu0
        %v510 = vadd.f32 %v487, %v509
        %511 = vdwg.mxu0
        %512 = vmatpush.xpose.msra.mxu0 %v372
        %513 = vmatpush.xpose.msra.mxu0 %v368
        %514 = vmatpush.xpose.msra.mxu0 %v364
        %515 = vmatpush.xpose.msra.mxu0 %v360
        %516 = vmatpush.xpose.msra.mxu0 %v356
        %517 = vmatpush.xpose.msra.mxu0 %v352
        %518 = vmatpush.xpose.msra.mxu0 %v348
        %519 = vmatpush.xpose.msra.mxu0 %v344
        %520 = vmatpush.xpose.msra.mxu0 %v340
        %521 = vmatpush.xpose.msra.mxu0 %v336
        %522 = vmatpush.xpose.msra.mxu0 %v332
        %523 = vmatpush.xpose.msra.mxu0 %v328
        %524 = vmatpush.xpose.msra.mxu0 %v324
        %525 = vmatpush.xpose.msra.mxu0 %v320
        %526 = vmatpush.xpose.msra.mxu0 %v316
        %527 = vmatpush.xpose.msra.mxu0 %v312
        %528 = vmatmul.f32.gmra.mxu0 %v240
        %v529 = vpop.f32.mrf.mxu0
        %v530 = vadd.f32 %v507, %v529
        %531 = vmatmul.f32.gmra.mxu0 %v244
        %v532 = vpop.f32.mrf.mxu0
        %v533 = vadd.f32 %v510, %v532
        %534 = vdwg.mxu0
        %535 = vmatpush.xpose.msra.mxu0 %v373
        %536 = vmatpush.xpose.msra.mxu0 %v369
        %537 = vmatpush.xpose.msra.mxu0 %v365
        %538 = vmatpush.xpose.msra.mxu0 %v361
        %539 = vmatpush.xpose.msra.mxu0 %v357
        %540 = vmatpush.xpose.msra.mxu0 %v353
        %541 = vmatpush.xpose.msra.mxu0 %v349
        %542 = vmatpush.xpose.msra.mxu0 %v345
        %543 = vmatpush.xpose.msra.mxu0 %v341
        %544 = vmatpush.xpose.msra.mxu0 %v337
        %545 = vmatpush.xpose.msra.mxu0 %v333
        %546 = vmatpush.xpose.msra.mxu0 %v329
        %547 = vmatpush.xpose.msra.mxu0 %v325
        %548 = vmatpush.xpose.msra.mxu0 %v321
        %549 = vmatpush.xpose.msra.mxu0 %v317
        %550 = vmatpush.xpose.msra.mxu0 %v313
        %551 = vmatmul.f32.gmra.mxu0 %v241
        %v552 = vpop.f32.mrf.mxu0
        %v553 = vadd.f32 %v530, %v552
        %554 = vmatmul.f32.gmra.mxu0 %v245
        %v555 = vpop.f32.mrf.mxu0
        %v556 = vadd.f32 %v533, %v555
        %557 = vdwg.mxu0
        %v558 = vadd.f32 %v234, %v461
        %v559 = vadd.f32 %v235, %v553
        %v560 = vadd.f32 %v236, %v464
        %v561 = vadd.f32 %v237, %v556
        %562 = vst [vmem:[#allocation2] sm:$0xff] %v558
        %563 = vst [vmem:[#allocation2 + $0x8] sm:$0xff] %v559
        %564 = vst [vmem:[#allocation2 + $0x10] sm:$0xff] %v560
        %565 = vst [vmem:[#allocation2 + $0x18] sm:$0xff] %v561
        // Predicated region
        $region41: #{tpu_custom_call.1} parent=27 // pred_check
          %p566 = pneg %p226
        $region42: #{tpu_custom_call.1} parent=27 // pred_check_branch
          %568 = sbr.rel (%p566) target = $region44
        $region43: #{tpu_custom_call.1} parent=27 // pred_region
          %v569 = vld [vmem:[#allocation2] sm:$0xff]
          %v570 = vld [vmem:[#allocation2 + $0x8] sm:$0xff]
          %v571 = vld [vmem:[#allocation2 + $0x10] sm:$0xff]
          %v572 = vld [vmem:[#allocation2 + $0x18] sm:$0xff]
          %573 = vst [vmem:[%s219] sm:$0xff] %v569
          %574 = vst [vmem:[%s219 + $0x8] sm:$0xff] %v570
          %575 = vst [vmem:[%s219 + $0x10] sm:$0xff] %v571
          %576 = vst [vmem:[%s219 + $0x18] sm:$0xff] %v572
        $region44: #{tpu_custom_call.1} parent=27 // pred_fallthru
          _
        %s577 = sand.u32 %s105, 1
        %s578 = scalar_lea.sflag [#allocation5], %s577
        %s579 = sand.u32 %s105, 1
        %s580 = smul.addr %s579, 32
        %s581 = scalar_lea.vmem [#allocation8], %s580
        // Predicated region
        $region45: #{tpu_custom_call.1} parent=27 // pred_check
          %p582 = pneg %p115
        $region46: #{tpu_custom_call.1} parent=27 // pred_check_branch
          %584 = sbr.rel (%p582) target = $region48
        $region47: #{tpu_custom_call.1} parent=27 // pred_region
          %s585 = smul.u32 2, %s25
          %s586 = smul.u32 2, %s26
          %588 = vsyncadd %s578, 0
          %s589 = smul.addr %s585, 4
          %s590 = sadd.s32 %s586, %s589
          %s591 = smul.addr %s590, 8
          %s592 = scalar_lea.hbm %s2, %s591
          %s593 = sshll.u32 %s581, 4
          %s594 = int_to_ptr.vmem [resolvable:$true] %s593
          %s595 = sshll.u32 %s592, 4
          %s596 = int_to_ptr.hbm [resolvable:$true] %s595
          %601 = dma.vmem_to_hbm [thread:$0]  %s594, 512, %s596, %s578, 256, 512, 16
        $region48: #{tpu_custom_call.1} parent=27 // pred_fallthru
          _
      $region28: #{tpu_custom_call.1} parent=5 // pred_fallthru
        _
      %p602 = scmp.le.s32.totalorder 2, %s15
      // Predicated region
      $region49: #{tpu_custom_call.1} parent=5 // pred_check
        %p603 = pneg %p602
      $region50: #{tpu_custom_call.1} parent=5 // pred_check_branch
        %605 = sbr.rel (%p603) target = $region52
      $region51: #{tpu_custom_call.1} parent=5 // pred_region
        %s606 = ssub.s32 %s15, 2
        // Predicated region
        $region53: #{tpu_custom_call.1} parent=51 // pred_check
          %p607 = pneg %p121
        $region54: #{tpu_custom_call.1} parent=51 // pred_check_branch
          %609 = sbr.rel (%p607) target = $region56
        $region55: #{tpu_custom_call.1} parent=51 // pred_region
          %s610 = sand.u32 %s106, 1
          %s611 = scalar_lea.sflag [#allocation5], %s610
          %s612 = sand.u32 %s106, 1
          %s613 = smul.addr %s612, 32
          %s614 = scalar_lea.vmem [#allocation8], %s613
          %616 = dma.done %s611, 512
        $region56: #{tpu_custom_call.1} parent=51 // pred_fallthru
          _
      $region52: #{tpu_custom_call.1} parent=5 // pred_fallthru
        _
    $region6: #{tpu_custom_call.1} parent=1 // loop_footer
      %s19 = sadd.s32 1, %s15
    $region7: #{tpu_custom_call.1} parent=1 // loop_footer_branch
      %14 = sbr.rel target = $region3
    $region8: #{tpu_custom_call.1} parent=1 // loop_exit
      _
    %617 = vsyncpa [#allocation4], 1
    %s618 = scalar_lea.sflag [#allocation4], 1
    %619 = vsyncpa %s618, 1
    %620 = vsyncpa [#allocation7], 1
    %s621 = scalar_lea.sflag [#allocation7], 1
    %622 = vsyncpa %s621, 1
    %623 = vsyncpa [#allocation5], 1
    %s624 = scalar_lea.sflag [#allocation5], 1
    %625 = vsyncpa %s624, 1

</llo_original>
